<compile_context>
chip_gen: v5e
topology: v5e:2x2
jax: 0.10.0
libtpu: 0.0.40
codegen_flags: <defaults>
</compile_context>

<pallas_src>
import functools

import jax
import jax.numpy as jnp
from jax.experimental import pallas as pl
from jax.experimental.pallas import tpu as pltpu

EPS = 1e-8


# ---------------------------------------------------------------------------
# Kernels
# ---------------------------------------------------------------------------

def _fused_kernel(x_ref, out_ref, last_ref, std_ref):
    """Full-T-in-VMEM path. Block: x/out (bb, T, ct); last/std (bb, 1, ct)."""
    x = x_ref[...].astype(jnp.float32)                     # (bb, T, ct)
    T = x.shape[1]

    last = x[:, T - 1:T, :]                                # (bb, 1, ct)

    # Two-pass unbiased variance over T (torch.std default, correction=1).
    mean = jnp.mean(x, axis=1, keepdims=True)              # (bb, 1, ct)
    d = x - mean
    # jnp divide so T == 1 yields NaN, exactly like torch.std(dim=1).
    var = jnp.sum(d * d, axis=1, keepdims=True) / jnp.float32(T - 1)
    std = jnp.sqrt(var)                                    # (bb, 1, ct)

    # One reciprocal per channel instead of T*C divisions.
    inv = pl.reciprocal(std + jnp.float32(EPS), approx=False)

    out_ref[...] = ((x - last) * inv).astype(out_ref.dtype)
    last_ref[...] = last.astype(last_ref.dtype)
    std_ref[...] = std.astype(std_ref.dtype)


def _stats_kernel(x_ref, last_ref, std_ref, mean_acc, m2_acc, *, total_t):
    """T-tiled stats pass: accumulate (mean, M2) with Chan's parallel-variance
    combine across T blocks (numerically stable). Grid: (B/bb, C/ct, T/tt)."""
    t = pl.program_id(2)
    tt = x_ref.shape[1]
    x = x_ref[...].astype(jnp.float32)                     # (bb, tt, ct)

    @pl.when(t == 0)
    def _():
        mean_acc[...] = jnp.zeros_like(mean_acc)
        m2_acc[...] = jnp.zeros_like(m2_acc)

    # Per-block two-pass stats.
    mean_b = jnp.mean(x, axis=1, keepdims=True)            # (bb, 1, ct)
    d = x - mean_b
    m2_b = jnp.sum(d * d, axis=1, keepdims=True)           # (bb, 1, ct)

    n_b = jnp.float32(tt)
    n_a = (t * tt).astype(jnp.float32)
    n_ab = n_a + n_b
    delta = mean_b - mean_acc[...]
    mean_acc[...] = mean_acc[...] + delta * (n_b / n_ab)
    m2_acc[...] = m2_acc[...] + m2_b + delta * delta * (n_a * n_b / n_ab)

    @pl.when(t == pl.num_programs(2) - 1)
    def _():
        last_ref[...] = x[:, tt - 1:tt, :].astype(last_ref.dtype)
        var = m2_acc[...] / jnp.float32(total_t - 1)
        std_ref[...] = jnp.sqrt(var).astype(std_ref.dtype)


def _normalize_kernel(x_ref, last_ref, std_ref, out_ref):
    """Second sweep of the T-tiled path: out = (x - last) / (std + eps)."""
    x = x_ref[...].astype(jnp.float32)
    last = last_ref[...].astype(jnp.float32)
    std = std_ref[...].astype(jnp.float32)
    inv = pl.reciprocal(std + jnp.float32(EPS), approx=False)
    out_ref[...] = ((x - last) * inv).astype(out_ref.dtype)


# ---------------------------------------------------------------------------
# Block-size selection (bytes-based, generation-aware)
# ---------------------------------------------------------------------------

def _vmem_budget():
    """Returns (per-step footprint budget bytes, vmem_limit_bytes)."""
    cap = 128 << 20
    try:
        cap = int(pltpu.get_tpu_info().vmem_capacity_bytes)
    except Exception:
        pass
    if cap <= (64 << 20):      # v7x-class: 64 MiB VMEM per TensorCore
        return 24 << 20, 40 << 20
    return 48 << 20, 64 << 20  # v5e / v6e: 128 MiB physical VMEM


def _largest_divisor_leq(n, limit):
    limit = min(n, max(1, limit))
    for d in range(limit, 0, -1):
        if n % d == 0:
            return d
    return 1


def _largest_proper_divisor(n):
    if n <= 1:
        return 1
    p = 2
    while p * p <= n:
        if n % p == 0:
            return n // p
        p += 1
    return 1  # n is prime


def _choose_fused_blocks(B, T, C, max_elems):
    """Pick (bb, ct) for the full-T fused kernel, or None if no config fits
    without dropping ct below 256 lanes (then prefer the T-tiled path)."""
    if C % 128 == 0:
        ct_cands = [c for c in range(C, 0, -128) if C % c == 0]
    else:
        ct_cands = [C]          # full-extent C block (no lane tiling possible)
    min_ct = C if C < 256 else 256
    for ct in ct_cands:
        if ct < min_ct:
            break
        if T * ct > max_elems:  # even bb == 1 doesn't fit; try a smaller ct
            continue
        bb = _largest_divisor_leq(B, max_elems // (T * ct))
        return bb, ct
    return None


def _split_for_two_steps(B, C, bb, ct):
    """Ensure >= 2 parallel grid steps so both v7x TensorCores get work."""
    if (B // bb) * (C // ct) >= 2:
        return bb, ct
    if B > 1:
        return _largest_proper_divisor(B), ct
    if C % 128 == 0 and ct > 128:
        for cand in range(ct - 128, 127, -128):
            if C % cand == 0:
                return bb, cand
    return bb, ct


def _choose_tt(T, C, max_elems):
    """Largest T tile (== T or a multiple of 8) dividing T that fits budget."""
    cands = {T}
    cands.update(t for t in range(8, T, 8) if T % t == 0)
    for t in sorted(cands, reverse=True):
        if t * C <= max_elems:
            return t
    # TODO(synk): T has no small multiple-of-8 divisor; block may exceed budget.
    return 8 if T % 8 == 0 else T


# ---------------------------------------------------------------------------
# Wrappers
# ---------------------------------------------------------------------------

def _run_fused(x, bb, ct, vmem_limit):
    B, T, C = x.shape
    grid = (B // bb, C // ct)
    out_shapes = (
        jax.ShapeDtypeStruct((B, T, C), x.dtype),   # normalized
        jax.ShapeDtypeStruct((B, 1, C), x.dtype),   # last
        jax.ShapeDtypeStruct((B, 1, C), x.dtype),   # std
    )
    grid_spec = pltpu.PrefetchScalarGridSpec(
        num_scalar_prefetch=0,
        grid=grid,
        in_specs=[pl.BlockSpec((bb, T, ct), lambda b, c: (b, 0, c))],
        out_specs=[
            pl.BlockSpec((bb, T, ct), lambda b, c: (b, 0, c)),
            pl.BlockSpec((bb, 1, ct), lambda b, c: (b, 0, c)),
            pl.BlockSpec((bb, 1, ct), lambda b, c: (b, 0, c)),
        ],
    )
    out, last, std = pl.pallas_call(
        _fused_kernel,
        out_shape=out_shapes,
        grid_spec=grid_spec,
        compiler_params=pltpu.CompilerParams(
            dimension_semantics=("parallel", "parallel"),
            vmem_limit_bytes=vmem_limit,
        ),
    )(x)
    return out, (last, std)


def _run_two_pass(x, max_elems, vmem_limit):
    """Fallback for long T: stats accumulation sweep, then a normalize sweep."""
    B, T, C = x.shape
    bb = 1
    tt = _choose_tt(T, C, max_elems)
    grid = (B, 1, T // tt)                      # (b, c, t); C kept full-extent

    stats_spec = pltpu.PrefetchScalarGridSpec(
        num_scalar_prefetch=0,
        grid=grid,
        in_specs=[pl.BlockSpec((bb, tt, C), lambda b, c, t: (b, t, c))],
        out_specs=[
            pl.BlockSpec((bb, 1, C), lambda b, c, t: (b, 0, c)),
            pl.BlockSpec((bb, 1, C), lambda b, c, t: (b, 0, c)),
        ],
        scratch_shapes=[
            pltpu.VMEM((bb, 1, C), jnp.float32),   # running mean
            pltpu.VMEM((bb, 1, C), jnp.float32),   # running M2
        ],
    )
    last, std = pl.pallas_call(
        functools.partial(_stats_kernel, total_t=T),
        out_shape=(
            jax.ShapeDtypeStruct((B, 1, C), x.dtype),
            jax.ShapeDtypeStruct((B, 1, C), x.dtype),
        ),
        grid_spec=stats_spec,
        compiler_params=pltpu.CompilerParams(
            dimension_semantics=("parallel", "parallel", "arbitrary"),
            vmem_limit_bytes=vmem_limit,
        ),
    )(x)

    norm_spec = pltpu.PrefetchScalarGridSpec(
        num_scalar_prefetch=0,
        grid=grid,
        in_specs=[
            pl.BlockSpec((bb, tt, C), lambda b, c, t: (b, t, c)),
            pl.BlockSpec((bb, 1, C), lambda b, c, t: (b, 0, c)),
            pl.BlockSpec((bb, 1, C), lambda b, c, t: (b, 0, c)),
        ],
        out_specs=pl.BlockSpec((bb, tt, C), lambda b, c, t: (b, t, c)),
    )
    out = pl.pallas_call(
        _normalize_kernel,
        out_shape=jax.ShapeDtypeStruct((B, T, C), x.dtype),
        grid_spec=norm_spec,
        compiler_params=pltpu.CompilerParams(
            dimension_semantics=("parallel", "parallel", "parallel"),
            vmem_limit_bytes=vmem_limit,
        ),
    )(x, last, std)
    return out, (last, std)


def last_point_norm(x, *, force_two_pass=False, max_block_elems=None):
    """x: (B, T, C). Returns (x_norm, (last, std)) with last/std of shape (B,1,C)."""
    B, T, C = x.shape
    footprint_budget, vmem_limit = _vmem_budget()
    itemsize = x.dtype.itemsize
    # Steady-state per-step footprint model:
    #   2 double-buffered input blocks + 2 double-buffered output blocks
    #   + ~3 live f32 temporaries created by the body.
    bytes_per_elem = 4 * itemsize + 12
    max_elems = max_block_elems if max_block_elems is not None else (
        footprint_budget // bytes_per_elem)

    fused = None if force_two_pass else _choose_fused_blocks(B, T, C, max_elems)
    if fused is not None:
        bb, ct = _split_for_two_steps(B, C, *fused)
        return _run_fused(x, bb, ct, vmem_limit)
    return _run_two_pass(x, max_elems, vmem_limit)


# ---------------------------------------------------------------------------
# Reference & checks
# ---------------------------------------------------------------------------

def _reference(x):
    """Pure-JAX reference mirroring the PyTorch module (two-pass std)."""
    last = x[:, -1:, :]
    mean = jnp.mean(x, axis=1, keepdims=True)
    var = jnp.sum((x - mean) ** 2, axis=1, keepdims=True) / (x.shape[1] - 1)
    std = jnp.sqrt(var)
    return (x - last) / (std + EPS), (last, std)


def _check(x, **kwargs):
    out, (last, std) = last_point_norm(x, **kwargs)
    jax.block_until_ready(out)
    jax.block_until_ready(last)
    jax.block_until_ready(std)

    ref_out, (ref_last, ref_std) = _reference(x)
    assert jnp.allclose(out, ref_out, atol=1e-4, rtol=1e-5), "out mismatch"
    assert jnp.allclose(last, ref_last, atol=1e-6, rtol=1e-6), "last mismatch"
    assert jnp.allclose(std, ref_std, atol=1e-5, rtol=1e-5), "std mismatch"


if __name__ == "__main__":
    key = jax.random.PRNGKey(0)
    k1, k2, k3 = jax.random.split(key, 3)

    # Small shape consistent with the module (full-extent C block, bb split
    # so both v7x TensorCores get a grid step).
    x_small = jax.random.normal(k1, (2, 8, 32), dtype=jnp.float32)
    _check(x_small)

    # Larger shape exercising the fused tiled path (B tiled, C full / tiled).
    x_tiled = jax.random.normal(k2, (16, 128, 1024), dtype=jnp.float32)
    _check(x_tiled)

    # Force the long-T two-pass (stats + normalize) path with a tiny budget so
    # the T-accumulation / Chan-combine code is exercised (tt=32, 2 T-steps).
    x_long = jax.random.normal(k3, (4, 64, 256), dtype=jnp.float32)
    _check(x_long, force_two_pass=True, max_block_elems=8192)

    print("KERNEL_OK")
</pallas_src>

<mosaic_0001>
module attributes {stable_mosaic.version = 11 : i64} {
  func.func @_fused_kernel(%arg0: i32, %arg1: i32, %arg2: memref<1x8x32xf32, #tpu.memory_space<vmem>>, %arg3: memref<1x8x32xf32, #tpu.memory_space<vmem>>, %arg4: memref<1x1x32xf32, #tpu.memory_space<vmem>>, %arg5: memref<1x1x32xf32, #tpu.memory_space<vmem>>) attributes {dimension_semantics = [#tpu.dimension_semantics<parallel>, #tpu.dimension_semantics<parallel>], iteration_bounds = array<i64: 2, 1>, scalar_prefetch = 0 : i64, scratch_operands = 0 : i64, tpu.core_type = #tpu.core_type<tc>, window_params = [{transform_indices = @transform_0, window_bounds = array<i64: 1, 8, 32>}, {transform_indices = @transform_1, window_bounds = array<i64: 1, 8, 32>}, {transform_indices = @transform_2, window_bounds = array<i64: 1, 1, 32>}, {transform_indices = @transform_3, window_bounds = array<i64: 1, 1, 32>}]} {
    %c0 = arith.constant 0 : index
    %c0_0 = arith.constant 0 : index
    %c0_1 = arith.constant 0 : index
    %0 = vector.load %arg2[%c0, %c0_0, %c0_1] : memref<1x8x32xf32, #tpu.memory_space<vmem>>, vector<1x8x32xf32>
    %1 = vector.extract_strided_slice %0 {offsets = [0, 7, 0], sizes = [1, 1, 32], strides = [1, 1, 1]} : vector<1x8x32xf32> to vector<1x1x32xf32>
    %cst = arith.constant dense<0.000000e+00> : vector<1x32xf32>
    %2 = vector.multi_reduction <add>, %0, %cst [1] : vector<1x8x32xf32> to vector<1x32xf32>
    %3 = vector.shape_cast %2 : vector<1x32xf32> to vector<1x1x32xf32>
    %cst_2 = arith.constant 8.000000e+00 : f32
    %4 = vector.broadcast %cst_2 : f32 to vector<1x1x32xf32>
    %5 = arith.divf %3, %4 : vector<1x1x32xf32>
    %6 = vector.broadcast %5 : vector<1x1x32xf32> to vector<1x8x32xf32>
    %7 = arith.subf %0, %6 : vector<1x8x32xf32>
    %8 = arith.mulf %7, %7 : vector<1x8x32xf32>
    %cst_3 = arith.constant dense<0.000000e+00> : vector<1x32xf32>
    %9 = vector.multi_reduction <add>, %8, %cst_3 [1] : vector<1x8x32xf32> to vector<1x32xf32>
    %10 = vector.shape_cast %9 : vector<1x32xf32> to vector<1x1x32xf32>
    %cst_4 = arith.constant 7.000000e+00 : f32
    %11 = vector.broadcast %cst_4 : f32 to vector<1x1x32xf32>
    %12 = arith.divf %10, %11 : vector<1x1x32xf32>
    %13 = math.sqrt %12 : vector<1x1x32xf32>
    %cst_5 = arith.constant 9.99999993E-9 : f32
    %14 = vector.broadcast %cst_5 : f32 to vector<1x1x32xf32>
    %15 = arith.addf %13, %14 : vector<1x1x32xf32>
    %16 = tpu.reciprocal %15 : vector<1x1x32xf32> -> vector<1x1x32xf32>
    %17 = vector.broadcast %1 : vector<1x1x32xf32> to vector<1x8x32xf32>
    %18 = arith.subf %0, %17 : vector<1x8x32xf32>
    %19 = vector.broadcast %16 : vector<1x1x32xf32> to vector<1x8x32xf32>
    %20 = arith.mulf %18, %19 : vector<1x8x32xf32>
    %c0_6 = arith.constant 0 : index
    %c0_7 = arith.constant 0 : index
    %c0_8 = arith.constant 0 : index
    %21 = vector.load %arg3[%c0_6, %c0_7, %c0_8] : memref<1x8x32xf32, #tpu.memory_space<vmem>>, vector<1x8x32xf32>
    tpu.vector_store %arg3[%c0_6, %c0_7, %c0_8], %20 {strides = array<i32>} : memref<1x8x32xf32, #tpu.memory_space<vmem>>, vector<1x8x32xf32>,
    %c0_9 = arith.constant 0 : index
    %c0_10 = arith.constant 0 : index
    %c0_11 = arith.constant 0 : index
    %22 = vector.load %arg4[%c0_9, %c0_10, %c0_11] : memref<1x1x32xf32, #tpu.memory_space<vmem>>, vector<1x1x32xf32>
    tpu.vector_store %arg4[%c0_9, %c0_10, %c0_11], %1 {strides = array<i32>} : memref<1x1x32xf32, #tpu.memory_space<vmem>>, vector<1x1x32xf32>,
    %c0_12 = arith.constant 0 : index
    %c0_13 = arith.constant 0 : index
    %c0_14 = arith.constant 0 : index
    %23 = vector.load %arg5[%c0_12, %c0_13, %c0_14] : memref<1x1x32xf32, #tpu.memory_space<vmem>>, vector<1x1x32xf32>
    tpu.vector_store %arg5[%c0_12, %c0_13, %c0_14], %13 {strides = array<i32>} : memref<1x1x32xf32, #tpu.memory_space<vmem>>, vector<1x1x32xf32>,
    return
  }
  func.func @transform_0(%arg0: i32, %arg1: i32) -> (i32, i32, i32) {
    %c0_i32 = arith.constant 0 : i32
    %c0_i32_0 = arith.constant 0 : i32
    return %arg0, %c0_i32, %arg1 : i32, i32, i32
  }
  func.func @transform_1(%arg0: i32, %arg1: i32) -> (i32, i32, i32) {
    %c0_i32 = arith.constant 0 : i32
    %c0_i32_0 = arith.constant 0 : i32
    return %arg0, %c0_i32, %arg1 : i32, i32, i32
  }
  func.func @transform_2(%arg0: i32, %arg1: i32) -> (i32, i32, i32) {
    %c0_i32 = arith.constant 0 : i32
    %c0_i32_0 = arith.constant 0 : i32
    return %arg0, %c0_i32, %arg1 : i32, i32, i32
  }
  func.func @transform_3(%arg0: i32, %arg1: i32) -> (i32, i32, i32) {
    %c0_i32 = arith.constant 0 : i32
    %c0_i32_0 = arith.constant 0 : i32
    return %arg0, %c0_i32, %arg1 : i32, i32, i32
  }
}

</mosaic_0001>

<llo_original>
// kernel: tpu_custom_call.1
$region0: #{tpu_custom_call.1}
  #allocation0 [shape = 'u32[]', space=smem, size = 0x4, offset = 0x4, fixed_abs, tag = 'smem constant byte address 0x4 - core index']
  #allocation1 [shape = 'u32[72,128]{1,0:T(1,128)}', space=vmem, size = 0x9000, scoped, tag = 'internal scratch']
  %s0 = inlined_call_operand.hbm [shape: f32[2,8,32], index: 0, kind: input, shape index: {}]
  %s1 = inlined_call_operand.hbm [shape: f32[2,8,32], index: 1, kind: output, shape index: {0}]
  %s2 = inlined_call_operand.hbm [shape: f32[2,1,32], index: 2, kind: output, shape index: {1}]
  %s3 = inlined_call_operand.hbm [shape: f32[2,1,32], index: 3, kind: output, shape index: {2}]
  %4 = xla_tuple %s1, %s2, %s3
  %s5 = sld [smem:[#allocation0]]
  $region57: #{tpu_custom_call.1} parent=0
    _
  %s7 = ssub.s32 1, %s5
  %s8 = scalar_select 0, %s7, %s5
  $region1: #{tpu_custom_call.1} parent=0
    #allocation2 [shape = 'u8[8192]{0}', space=vmem, size = 0x2000, scoped, tag = 'input window, operand 0']
    #allocation3 [shape = 's32[2]{0}', space=sflag, size = 0x8, scoped, tag = 'scoped memory for tpu_custom_call.1']
    #allocation4 [shape = 's32[2]{0}', space=sflag, size = 0x8, scoped, tag = 'scoped memory for tpu_custom_call.1']
    #allocation5 [shape = 'u8[8192]{0}', space=vmem, size = 0x2000, scoped, tag = 'output window, operand 0']
    #allocation6 [shape = 'u8[1024]{0}', space=vmem, size = 0x400, scoped, tag = 'output window, operand 1']
    #allocation7 [shape = 's32[2]{0}', space=sflag, size = 0x8, scoped, tag = 'scoped memory for tpu_custom_call.1']
    #allocation8 [shape = 'u8[1024]{0}', space=vmem, size = 0x400, scoped, tag = 'output window, operand 2']
    %9 = vsyncpa [#allocation3], 0
    %s10 = scalar_lea.sflag [#allocation3], 1
    %11 = vsyncpa %s10, 0
    %12 = vsyncpa [#allocation4], 0
    %s13 = scalar_lea.sflag [#allocation4], 1
    %14 = vsyncpa %s13, 0
    %15 = vsyncpa [#allocation7], 0
    %s16 = scalar_lea.sflag [#allocation7], 1
    %17 = vsyncpa %s16, 0
    loop: start=0, step=1, limit=4
    $region2: #{tpu_custom_call.1} parent=1 // loop_pre_header
      _
    $region3: #{tpu_custom_call.1} parent=1 // loop_header
      %s19 = sphi 0, %s23
      %p20 = scmp.ge.s32.totalorder %s19, 4
      %s26 = sphi 0, %s38
      %s27 = sphi 0, %s34
      %s28 = sphi 0, %s26
      %s29 = sphi 0, %s27
      %s30 = sphi 0, %s28
      %s31 = sphi 0, %s29
      %s43 = sphi 0, %s45
      %s46 = sphi 0, %s43
      %s47 = sphi 0, %s46
      %s63 = sphi 0, %s47
      %s71 = sphi 0, %s73
      %s74 = sphi 0, %s71
      %s75 = sphi 0, %s74
      %s91 = sphi 0, %s75
      %s99 = sphi 0, %s101
      %s102 = sphi 0, %s99
      %s103 = sphi 0, %s102
      %s119 = sphi 0, %s103
      %s127 = sphi 0, %s129
      %s130 = sphi 0, %s127
      %s131 = sphi 0, %s130
      %s147 = sphi 0, %s131
    $region4: #{tpu_custom_call.1} parent=1 // loop_header_branch
      %22 = sbr.rel (%p20) target = $region8
    $region5: #{tpu_custom_call.1} parent=1 // loop_body
      %s24 = ssub.s32 %s19, 1
      %s25 = ssub.s32 %s19, 2
      %s32 = sadd.s32 1, %s27
      %p33 = scmp.ge.s32.totalorder %s32, 1
      %s34 = scalar_select %p33, 0, %s32
      %s35 = sadd.s32 1, %s26
      %s36 = scalar_select %p33, %s35, %s26
      %p37 = scmp.ge.s32.totalorder %s36, 2
      %s38 = scalar_select %p37, 0, %s36
      %s39 = ssub.s32 %s26, %s38
      %s40 = ssub.s32 %s27, %s34
      %s41 = sor.u32 %s39, %s40
      %p42 = scmp.eq.s32.totalorder %s41, 0
      %s44 = sadd.s32 %s43, 1
      %s45 = scalar_select %p42, %s43, %s44
      %p48 = pneg %p42
      %p49 = scmp.eq.s32.totalorder %s19, 1
      %p50 = por %p48, %p49
      %p51 = scmp.ne.s32.totalorder %s43, %s46
      %p52 = scmp.eq.s32.totalorder %s19, 0
      %p53 = por %p51, %p52
      %p54 = scmp.ne.s32.totalorder %s43, %s46
      %p55 = scmp.eq.s32.totalorder %s24, 1
      %p56 = por %p54, %p55
      %p57 = scmp.ne.s32.totalorder %s46, %s47
      %p58 = scmp.eq.s32.totalorder %s24, 0
      %p59 = por %p57, %p58
      %p60 = scmp.ne.s32.totalorder %s46, %s47
      %p61 = scmp.eq.s32.totalorder %s25, 1
      %p62 = por %p60, %p61
      %p64 = scmp.ne.s32.totalorder %s47, %s63
      %p65 = scmp.eq.s32.totalorder %s25, 0
      %p66 = por %p64, %p65
      %s67 = ssub.s32 %s26, %s38
      %s68 = ssub.s32 %s27, %s34
      %s69 = sor.u32 %s67, %s68
      %p70 = scmp.eq.s32.totalorder %s69, 0
      %s72 = sadd.s32 %s71, 1
      %s73 = scalar_select %p70, %s71, %s72
      %p76 = pneg %p70
      %p77 = scmp.eq.s32.totalorder %s19, 1
      %p78 = por %p76, %p77
      %p79 = scmp.ne.s32.totalorder %s71, %s74
      %p80 = scmp.eq.s32.totalorder %s19, 0
      %p81 = por %p79, %p80
      %p82 = scmp.ne.s32.totalorder %s71, %s74
      %p83 = scmp.eq.s32.totalorder %s24, 1
      %p84 = por %p82, %p83
      %p85 = scmp.ne.s32.totalorder %s74, %s75
      %p86 = scmp.eq.s32.totalorder %s24, 0
      %p87 = por %p85, %p86
      %p88 = scmp.ne.s32.totalorder %s74, %s75
      %p89 = scmp.eq.s32.totalorder %s25, 1
      %p90 = por %p88, %p89
      %p92 = scmp.ne.s32.totalorder %s75, %s91
      %p93 = scmp.eq.s32.totalorder %s25, 0
      %p94 = por %p92, %p93
      %s95 = ssub.s32 %s26, %s38
      %s96 = ssub.s32 %s27, %s34
      %s97 = sor.u32 %s95, %s96
      %p98 = scmp.eq.s32.totalorder %s97, 0
      %s100 = sadd.s32 %s99, 1
      %s101 = scalar_select %p98, %s99, %s100
      %p104 = pneg %p98
      %p105 = scmp.eq.s32.totalorder %s19, 1
      %p106 = por %p104, %p105
      %p107 = scmp.ne.s32.totalorder %s99, %s102
      %p108 = scmp.eq.s32.totalorder %s19, 0
      %p109 = por %p107, %p108
      %p110 = scmp.ne.s32.totalorder %s99, %s102
      %p111 = scmp.eq.s32.totalorder %s24, 1
      %p112 = por %p110, %p111
      %p113 = scmp.ne.s32.totalorder %s102, %s103
      %p114 = scmp.eq.s32.totalorder %s24, 0
      %p115 = por %p113, %p114
      %p116 = scmp.ne.s32.totalorder %s102, %s103
      %p117 = scmp.eq.s32.totalorder %s25, 1
      %p118 = por %p116, %p117
      %p120 = scmp.ne.s32.totalorder %s103, %s119
      %p121 = scmp.eq.s32.totalorder %s25, 0
      %p122 = por %p120, %p121
      %s123 = ssub.s32 %s26, %s38
      %s124 = ssub.s32 %s27, %s34
      %s125 = sor.u32 %s123, %s124
      %p126 = scmp.eq.s32.totalorder %s125, 0
      %s128 = sadd.s32 %s127, 1
      %s129 = scalar_select %p126, %s127, %s128
      %p132 = pneg %p126
      %p133 = scmp.eq.s32.totalorder %s19, 1
      %p134 = por %p132, %p133
      %p135 = scmp.ne.s32.totalorder %s127, %s130
      %p136 = scmp.eq.s32.totalorder %s19, 0
      %p137 = por %p135, %p136
      %p138 = scmp.ne.s32.totalorder %s127, %s130
      %p139 = scmp.eq.s32.totalorder %s24, 1
      %p140 = por %p138, %p139
      %p141 = scmp.ne.s32.totalorder %s130, %s131
      %p142 = scmp.eq.s32.totalorder %s24, 0
      %p143 = por %p141, %p142
      %p144 = scmp.ne.s32.totalorder %s130, %s131
      %p145 = scmp.eq.s32.totalorder %s25, 1
      %p146 = por %p144, %p145
      %p148 = scmp.ne.s32.totalorder %s131, %s147
      %p149 = scmp.eq.s32.totalorder %s25, 0
      %p150 = por %p148, %p149
      %p151 = scmp.le.s32.totalorder 1, %s19
      %p152 = scmp.lt.s32.totalorder %s19, 3
      %p153 = pnand %p151, %p152
      %p154 = pneg %p153
      // Predicated region
      $region9: #{tpu_custom_call.1} parent=5 // pred_check
        _
      $region10: #{tpu_custom_call.1} parent=5 // pred_check_branch
        %156 = sbr.rel (%p153) target = $region12
      $region11: #{tpu_custom_call.1} parent=5 // pred_region
        %s157 = ssub.s32 %s19, 1
      $region12: #{tpu_custom_call.1} parent=5 // pred_fallthru
        _
      %p158 = scmp.lt.s32.totalorder %s19, 2
      // Predicated region
      $region13: #{tpu_custom_call.1} parent=5 // pred_check
        %p159 = pneg %p158
      $region14: #{tpu_custom_call.1} parent=5 // pred_check_branch
        %161 = sbr.rel (%p159) target = $region16
      $region15: #{tpu_custom_call.1} parent=5 // pred_region
        // Predicated region
        $region17: #{tpu_custom_call.1} parent=15 // pred_check
          %p162 = pneg %p53
        $region18: #{tpu_custom_call.1} parent=15 // pred_check_branch
          %164 = sbr.rel (%p162) target = $region20
        $region19: #{tpu_custom_call.1} parent=15 // pred_region
          %s165 = sand.u32 %s43, 1
          %s166 = scalar_lea.sflag [#allocation3], %s165
          %s167 = sand.u32 %s43, 1
          %s168 = smul.addr %s167, 8
          %s169 = scalar_lea.vmem [#allocation2], %s168
          %171 = vsyncadd %s166, 0
          %s172 = sadd.s32 %s27, %s26
          %s173 = smul.addr %s172, 8
          %s174 = scalar_lea.hbm %s0, %s173
          %s176 = sshll.u32 %s174, 4
          %s177 = int_to_ptr.hbm [resolvable:$true] %s176
          %s178 = sshll.u32 %s169, 4
          %s179 = int_to_ptr.vmem [resolvable:$true] %s178
          %181 = dma.hbm_to_vmem [thread:$0]  %s177, 128, %s179, %s166
        $region20: #{tpu_custom_call.1} parent=15 // pred_fallthru
          _
      $region16: #{tpu_custom_call.1} parent=5 // pred_fallthru
        _
      %p182 = scmp.le.s32.totalorder 1, %s19
      %p183 = scmp.lt.s32.totalorder %s19, 3
      %p184 = pnand %p182, %p183
      %p185 = pneg %p184
      // Predicated region
      $region21: #{tpu_custom_call.1} parent=5 // pred_check
        _
      $region22: #{tpu_custom_call.1} parent=5 // pred_check_branch
        %187 = sbr.rel (%p184) target = $region24
      $region23: #{tpu_custom_call.1} parent=5 // pred_region
        %s188 = ssub.s32 %s19, 1
        %s189 = sand.u32 %s46, 1
        %s190 = scalar_lea.sflag [#allocation3], %s189
        %s191 = sand.u32 %s46, 1
        %s192 = smul.addr %s191, 8
        %s193 = scalar_lea.vmem [#allocation2], %s192
        // Predicated region
        $region25: #{tpu_custom_call.1} parent=23 // pred_check
          %p194 = pneg %p59
        $region26: #{tpu_custom_call.1} parent=23 // pred_check_branch
          %196 = sbr.rel (%p194) target = $region28
        $region27: #{tpu_custom_call.1} parent=23 // pred_region
          %198 = dma.done %s190, 128
        $region28: #{tpu_custom_call.1} parent=23 // pred_fallthru
          _
        %s199 = sand.u32 %s46, 1
        %s200 = scalar_lea.sflag [#allocation3], %s199
        %s201 = sand.u32 %s46, 1
        %s202 = smul.addr %s201, 8
        %s203 = scalar_lea.vmem [#allocation2], %s202
        %p204 = pneg %p59
        %p205 = pneg %p56
        %p206 = pneg %p87
        %p207 = pneg %p84
        %s208 = sand.u32 %s74, 1
        %s209 = scalar_lea.sflag [#allocation4], %s208
        %s210 = sand.u32 %s74, 1
        %s211 = smul.addr %s210, 8
        %s212 = scalar_lea.vmem [#allocation5], %s211
        %p213 = pneg %p115
        %p214 = pneg %p112
        %s215 = sand.u32 %s24, 1
        %s216 = scalar_lea.sflag [#allocation7], %s215
        %s217 = sand.u32 %s102, 1
        %s218 = scalar_lea.vmem [#allocation6], %s217
        %p219 = pneg %p143
        %p220 = pneg %p140
        %s221 = sand.u32 %s24, 1
        %s222 = scalar_lea.sflag [#allocation7], %s221
        %s223 = sand.u32 %s130, 1
        %s224 = scalar_lea.vmem [#allocation8], %s223
        %v225 = vld [vmem:[%s193] sm:$0xff]
        %vm226 = vcmask 261120
        %v227 = vsel %vm226, %v225, 0.0
        %v228 = vrot.slane %v227, 4
        %v229 = vadd.f32 %v227, %v228
        %v230 = vrot.slane %v229, 2
        %v231 = vadd.f32 %v229, %v230
        %v232 = vrot.slane %v231, 1
        %v233 = vadd.f32 %v231, %v232
        %v234 = vrcp.pop 8.0
        %v235 = vmul.f32 8.0, %v234
        %v236 = vsub.f32 1.0, %v235
        %v237 = vmul.f32 %v234, %v236
        %v238 = vadd.f32 %v234, %v237
        %vm239 = vweird.f32 %v234
        %v240 = vsel %vm239, %v234, %v238
        %v241 = vmul.f32 %v233, %v240
        %v242 = vsub.f32 %v225, %v241
        %v243 = vmul.f32 %v242, %v242
        %v244 = vsel %vm226, %v243, 0.0
        %v245 = vrot.slane %v244, 4
        %v246 = vadd.f32 %v244, %v245
        %v247 = vrot.slane %v246, 2
        %v248 = vadd.f32 %v246, %v247
        %v249 = vrot.slane %v248, 1
        %v250 = vadd.f32 %v248, %v249
        %v251 = vrcp.pop 7.0
        %v252 = vmul.f32 7.0, %v251
        %v253 = vsub.f32 1.0, %v252
        %v254 = vmul.f32 %v251, %v253
        %v255 = vadd.f32 %v251, %v254
        %vm256 = vweird.f32 %v251
        %v257 = vsel %vm256, %v251, %v255
        %v258 = vmul.f32 %v250, %v257
        %v259 = vrsqrt.pop %v258
        %v260 = vmul.f32 %v259, %v258
        %v261 = vmul.f32 %v260, %v259
        %v262 = vmul.f32 0.5, %v261
        %v263 = vsub.f32 1.5, %v262
        %v264 = vmul.f32 %v259, %v263
        %v265 = vmul.f32 %v258, %v264
        %vm266 = vcmp.eq.f32.partialorder %v258, inf
        %v267 = vsel %vm266, %v258, %v265
        %vm268 = vcmp.eq.f32.partialorder %v258, 0.0
        %v269 = vand.u32 %v258, 2147483648
        %v270 = vsel %vm268, %v269, %v267
        %v271 = vadd.f32 %v270, 1e-08
        %v272 = vrcp.pop %v271
        %v273 = vmul.f32 %v271, %v272
        %v274 = vsub.f32 1.0, %v273
        %v275 = vmul.f32 %v272, %v274
        %v276 = vadd.f32 %v272, %v275
        %vm277 = vweird.f32 %v271
        %vm278 = vweird.f32 %v272
        %vm279 = vmor %vm277, %vm278
        %v280 = vsel %vm279, %v272, %v276
        %v281 = vand.u32 2147483647, %v271
        %vm282 = vcmp.eq.f32.partialorder %v281, 8.507059e+37
        %v283 = vand.u32 %v271, 2147483648
        %v284 = vor.u32 1.1754944e-38, %v283
        %v285 = vsel %vm282, %v284, %v280
        %v286 = vperm.slane %v225, 7
        %v287 = vsub.f32 %v225, %v286
        %v288 = vmul.f32 %v287, %v285
        %289 = vst.msk [vmem:[%s212] sm:$0xff] %vm226, %v288
        %vm290 = vcmask 261127
        %291 = vst.msk [vmem:[%s218 - $0x7] sm:$0x80] %vm290, %v225
        %vm292 = vcmask 253952
        %293 = vst.msk [vmem:[%s224] sm:$0x1] %vm292, %v270
        %s294 = sand.u32 %s74, 1
        %s295 = scalar_lea.sflag [#allocation4], %s294
        %s296 = sand.u32 %s74, 1
        %s297 = smul.addr %s296, 8
        %s298 = scalar_lea.vmem [#allocation5], %s297
        %s299 = sand.u32 %s24, 1
        %s300 = scalar_lea.sflag [#allocation7], %s299
        %s301 = sand.u32 %s102, 1
        %s302 = scalar_lea.vmem [#allocation6], %s301
        %s303 = sand.u32 %s24, 1
        %s304 = scalar_lea.sflag [#allocation7], %s303
        %s305 = sand.u32 %s130, 1
        %s306 = scalar_lea.vmem [#allocation8], %s305
        // Predicated region
        $region29: #{tpu_custom_call.1} parent=23 // pred_check
          %p307 = pneg %p84
        $region30: #{tpu_custom_call.1} parent=23 // pred_check_branch
          %309 = sbr.rel (%p307) target = $region32
        $region31: #{tpu_custom_call.1} parent=23 // pred_region
          %311 = vsyncadd %s295, 0
          %s312 = sadd.s32 %s29, %s28
          %s313 = smul.addr %s312, 8
          %s314 = scalar_lea.hbm %s1, %s313
          %s316 = sshll.u32 %s298, 4
          %s317 = int_to_ptr.vmem [resolvable:$true] %s316
          %s318 = sshll.u32 %s314, 4
          %s319 = int_to_ptr.hbm [resolvable:$true] %s318
          %321 = dma.vmem_to_hbm [thread:$0]  %s317, 128, %s319, %s295
        $region32: #{tpu_custom_call.1} parent=23 // pred_fallthru
          _
        // Predicated region
        $region33: #{tpu_custom_call.1} parent=23 // pred_check
          %p322 = pneg %p112
        $region34: #{tpu_custom_call.1} parent=23 // pred_check_branch
          %324 = sbr.rel (%p322) target = $region36
        $region35: #{tpu_custom_call.1} parent=23 // pred_region
          %326 = vsyncadd %s300, 0
          %s327 = sadd.s32 %s29, %s28
          %s328 = scalar_lea.hbm %s2, %s327
          %s330 = sshll.u32 %s302, 4
          %s331 = int_to_ptr.vmem [resolvable:$true] %s330
          %s332 = sshll.u32 %s328, 4
          %s333 = int_to_ptr.hbm [resolvable:$true] %s332
          %335 = dma.vmem_to_hbm [thread:$0]  %s331, 16, %s333, %s300
        $region36: #{tpu_custom_call.1} parent=23 // pred_fallthru
          _
        // Predicated region
        $region37: #{tpu_custom_call.1} parent=23 // pred_check
          %p336 = pneg %p140
        $region38: #{tpu_custom_call.1} parent=23 // pred_check_branch
          %338 = sbr.rel (%p336) target = $region40
        $region39: #{tpu_custom_call.1} parent=23 // pred_region
          %340 = vsyncadd %s304, 0
          %s341 = sadd.s32 %s29, %s28
          %s342 = scalar_lea.hbm %s3, %s341
          %s344 = sshll.u32 %s306, 4
          %s345 = int_to_ptr.vmem [resolvable:$true] %s344
          %s346 = sshll.u32 %s342, 4
          %s347 = int_to_ptr.hbm [resolvable:$true] %s346
          %349 = dma.vmem_to_hbm [thread:$0]  %s345, 16, %s347, %s304
        $region40: #{tpu_custom_call.1} parent=23 // pred_fallthru
          _
      $region24: #{tpu_custom_call.1} parent=5 // pred_fallthru
        _
      %p350 = scmp.le.s32.totalorder 2, %s19
      // Predicated region
      $region41: #{tpu_custom_call.1} parent=5 // pred_check
        %p351 = pneg %p350
      $region42: #{tpu_custom_call.1} parent=5 // pred_check_branch
        %353 = sbr.rel (%p351) target = $region44
      $region43: #{tpu_custom_call.1} parent=5 // pred_region
        %s354 = ssub.s32 %s19, 2
        // Predicated region
        $region45: #{tpu_custom_call.1} parent=43 // pred_check
          %p355 = pneg %p90
        $region46: #{tpu_custom_call.1} parent=43 // pred_check_branch
          %357 = sbr.rel (%p355) target = $region48
        $region47: #{tpu_custom_call.1} parent=43 // pred_region
          %s358 = sand.u32 %s75, 1
          %s359 = scalar_lea.sflag [#allocation4], %s358
          %s360 = sand.u32 %s75, 1
          %s361 = smul.addr %s360, 8
          %s362 = scalar_lea.vmem [#allocation5], %s361
          %364 = dma.done %s359, 128
        $region48: #{tpu_custom_call.1} parent=43 // pred_fallthru
          _
        // Predicated region
        $region49: #{tpu_custom_call.1} parent=43 // pred_check
          %p365 = pneg %p118
        $region50: #{tpu_custom_call.1} parent=43 // pred_check_branch
          %367 = sbr.rel (%p365) target = $region52
        $region51: #{tpu_custom_call.1} parent=43 // pred_region
          %s368 = sand.u32 %s25, 1
          %s369 = scalar_lea.sflag [#allocation7], %s368
          %s370 = sand.u32 %s103, 1
          %s371 = scalar_lea.vmem [#allocation6], %s370
          %373 = dma.done %s369, 16
        $region52: #{tpu_custom_call.1} parent=43 // pred_fallthru
          _
        // Predicated region
        $region53: #{tpu_custom_call.1} parent=43 // pred_check
          %p374 = pneg %p146
        $region54: #{tpu_custom_call.1} parent=43 // pred_check_branch
          %376 = sbr.rel (%p374) target = $region56
        $region55: #{tpu_custom_call.1} parent=43 // pred_region
          %s377 = sand.u32 %s25, 1
          %s378 = scalar_lea.sflag [#allocation7], %s377
          %s379 = sand.u32 %s131, 1
          %s380 = scalar_lea.vmem [#allocation8], %s379
          %382 = dma.done %s378, 16
        $region56: #{tpu_custom_call.1} parent=43 // pred_fallthru
          _
      $region44: #{tpu_custom_call.1} parent=5 // pred_fallthru
        _
    $region6: #{tpu_custom_call.1} parent=1 // loop_footer
      %s23 = sadd.s32 1, %s19
    $region7: #{tpu_custom_call.1} parent=1 // loop_footer_branch
      %18 = sbr.rel target = $region3
    $region8: #{tpu_custom_call.1} parent=1 // loop_exit
      _
    %383 = vsyncpa [#allocation3], 1
    %s384 = scalar_lea.sflag [#allocation3], 1
    %385 = vsyncpa %s384, 1
    %386 = vsyncpa [#allocation4], 1
    %s387 = scalar_lea.sflag [#allocation4], 1
    %388 = vsyncpa %s387, 1
    %389 = vsyncpa [#allocation7], 1
    %s390 = scalar_lea.sflag [#allocation7], 1
    %391 = vsyncpa %s390, 1

</llo_original>
